<compile_context>
chip_gen: v7x
topology: tpu7x:2x2x1
jax: 0.10.0
libtpu: 0.0.40
codegen_flags: <defaults>
</compile_context>

<pallas_src>
import jax
import jax.numpy as jnp
import numpy as np
from jax.experimental import pallas as pl
from jax.experimental.pallas import tpu as pltpu


def _attention_kernel(hid_ref, enc_ref, wh_ref, we_ref, b_ref, v_ref, out_ref):
    """One batch block of concat-attention: energy -> score -> softmax over T."""
    bb, t, he2 = enc_ref.shape
    dd = wh_ref.shape[1]

    # Hidden projection, once per batch row (mathematically identical to PyTorch's
    # repeat(hidden, T) followed by the Linear; T x less work on this operand).
    hp = jnp.dot(hid_ref[...], wh_ref[...],
                 preferred_element_type=jnp.float32) + b_ref[...]          # [bb, Dd]

    # Encoder projection as a single large MXU matmul on the flattened block
    # (collapses leading dims only, lane dim untouched -> no relayout).
    ep = jnp.dot(enc_ref[...].reshape(bb * t, he2), we_ref[...],
                 preferred_element_type=jnp.float32).reshape(bb, t, dd)    # [bb, T, Dd]

    # energy = tanh(W_h h + W_e e + b); tanh runs on the EUP (separate bundle slot).
    energy = jnp.tanh(ep + hp[:, None, :])                                 # [bb, T, Dd]

    # v^T . energy, reduced along the lane (feature) axis (XLU reduce).
    scores = jnp.sum(energy * v_ref[...][None, :, :], axis=-1)             # [bb, T]

    # Softmax over source positions (last / lane axis), fused in-kernel.
    m = jnp.max(scores, axis=-1, keepdims=True)
    e = jnp.exp(scores - m)
    out_ref[...] = e / jnp.sum(e, axis=-1, keepdims=True)


def attention_forward(hidden, encoder_outputs, params):
    """hidden [B, Dd], encoder_outputs [T, B, 2He] -> attention weights [B, T]."""
    T, B, He2 = encoder_outputs.shape
    Dd = hidden.shape[1]

    attn_w = params["attn_w"]          # [Dd, Dd + 2He]  (PyTorch Linear: [out, in])
    attn_b = params["attn_b"]          # [Dd]
    v_w = params["v_w"]                # [1, Dd]

    # Split the concat-Linear: cat order in the module is (hidden, encoder_outputs),
    # so the first Dd input columns act on `hidden`, the remaining 2He on the encoder.
    wh = attn_w[:, :Dd].T.astype(jnp.float32)    # [Dd, Dd]
    we = attn_w[:, Dd:].T.astype(jnp.float32)    # [2He, Dd]

    # Glue: seq-first -> batch-first (same as the module's permute(1, 0, 2)).
    enc_bt = jnp.transpose(encoder_outputs, (1, 0, 2)).astype(jnp.float32)  # [B, T, 2He]
    hidden = hidden.astype(jnp.float32)

    # Batch tiling: 8-row sublane blocks when the batch divides evenly (lets the batch
    # axis shard across cores); otherwise one program takes the whole (small) batch so
    # every block equals the full array extent and the (8,128) rule is satisfied.
    bb = 8 if (B % 8 == 0) else B
    grid = (B // bb,)

    out = pl.pallas_call(
        _attention_kernel,
        out_shape=jax.ShapeDtypeStruct((B, T), jnp.float32),
        grid=grid,
        in_specs=[
            pl.BlockSpec((bb, Dd), lambda i: (i, 0)),          # hidden block
            pl.BlockSpec((bb, T, He2), lambda i: (i, 0, 0)),   # encoder outputs (batch-first)
            pl.BlockSpec((Dd, Dd), lambda i: (0, 0)),          # W_h (resident across grid)
            pl.BlockSpec((He2, Dd), lambda i: (0, 0)),         # W_e (resident across grid)
            pl.BlockSpec((1, Dd), lambda i: (0, 0)),           # attn bias
            pl.BlockSpec((1, Dd), lambda i: (0, 0)),           # v
        ],
        out_specs=pl.BlockSpec((bb, T), lambda i: (i, 0)),
        compiler_params=pltpu.CompilerParams(
            dimension_semantics=("parallel",),
        ),
    )(hidden, enc_bt, wh, we,
      attn_b[None, :].astype(jnp.float32), v_w.astype(jnp.float32))
    return out


def _reference_attention(hidden, encoder_outputs, params):
    """Pure-JAX mirror of the PyTorch forward, for verification."""
    T = encoder_outputs.shape[0]
    hid_rep = jnp.repeat(hidden[:, None, :], T, axis=1)               # [B, T, Dd]
    enc = jnp.transpose(encoder_outputs, (1, 0, 2))                   # [B, T, 2He]
    cat = jnp.concatenate([hid_rep, enc], axis=2)                     # [B, T, Dd+2He]
    energy = jnp.tanh(cat @ params["attn_w"].T + params["attn_b"])    # [B, T, Dd]
    attention = jnp.squeeze(energy @ params["v_w"].T, axis=2)         # [B, T]
    return jax.nn.softmax(attention, axis=1)


def init_params(key, enc_hid_dim, dec_hid_dim):
    k1, k2, k3 = jax.random.split(key, 3)
    in_dim = 2 * enc_hid_dim + dec_hid_dim
    s_attn = 1.0 / np.sqrt(in_dim)
    s_v = 1.0 / np.sqrt(dec_hid_dim)
    return {
        "attn_w": jax.random.uniform(k1, (dec_hid_dim, in_dim), jnp.float32, -s_attn, s_attn),
        "attn_b": jax.random.uniform(k2, (dec_hid_dim,), jnp.float32, -s_attn, s_attn),
        "v_w": jax.random.uniform(k3, (1, dec_hid_dim), jnp.float32, -s_v, s_v),
    }


if __name__ == "__main__":
    ENC_HID_DIM = 32
    DEC_HID_DIM = 32
    T, B = 8, 2           # src_len, batch

    key = jax.random.PRNGKey(0)
    k_param, k_hid, k_enc = jax.random.split(key, 3)
    params = init_params(k_param, ENC_HID_DIM, DEC_HID_DIM)
    hidden = jax.random.normal(k_hid, (B, DEC_HID_DIM), jnp.float32)
    encoder_outputs = jax.random.normal(k_enc, (T, B, 2 * ENC_HID_DIM), jnp.float32)

    attn = jax.jit(attention_forward)(hidden, encoder_outputs, params)
    jax.block_until_ready(attn)

    ref = _reference_attention(hidden, encoder_outputs, params)
    np.testing.assert_allclose(np.asarray(attn), np.asarray(ref), rtol=1e-5, atol=1e-6)
    assert attn.shape == (B, T)
    np.testing.assert_allclose(np.asarray(attn).sum(axis=1), np.ones(B), rtol=1e-5, atol=1e-6)

    print("KERNEL_OK")
</pallas_src>

<mosaic_0001>
module attributes {stable_mosaic.version = 11 : i64} {
  func.func @_attention_kernel(%arg0: i32, %arg1: memref<2x32xf32, #tpu.memory_space<vmem>>, %arg2: memref<2x8x64xf32, #tpu.memory_space<vmem>>, %arg3: memref<32x32xf32, #tpu.memory_space<vmem>>, %arg4: memref<64x32xf32, #tpu.memory_space<vmem>>, %arg5: memref<1x32xf32, #tpu.memory_space<vmem>>, %arg6: memref<1x32xf32, #tpu.memory_space<vmem>>, %arg7: memref<2x8xf32, #tpu.memory_space<vmem>>) attributes {dimension_semantics = [#tpu.dimension_semantics<parallel>], iteration_bounds = array<i64: 1>, scalar_prefetch = 0 : i64, scratch_operands = 0 : i64, tpu.core_type = #tpu.core_type<tc>, window_params = [{transform_indices = @transform_0, window_bounds = array<i64: 2, 32>}, {transform_indices = @transform_1, window_bounds = array<i64: 2, 8, 64>}, {pipeline_mode = #tpu.pipeline_mode<synchronous>, transform_indices = @transform_2, window_bounds = array<i64: 32, 32>}, {pipeline_mode = #tpu.pipeline_mode<synchronous>, transform_indices = @transform_3, window_bounds = array<i64: 64, 32>}, {pipeline_mode = #tpu.pipeline_mode<synchronous>, transform_indices = @transform_4, window_bounds = array<i64: 1, 32>}, {pipeline_mode = #tpu.pipeline_mode<synchronous>, transform_indices = @transform_5, window_bounds = array<i64: 1, 32>}, {transform_indices = @transform_6, window_bounds = array<i64: 2, 8>}]} {
    %c0 = arith.constant 0 : index
    %c0_0 = arith.constant 0 : index
    %0 = vector.load %arg1[%c0, %c0_0] : memref<2x32xf32, #tpu.memory_space<vmem>>, vector<2x32xf32>
    %c0_1 = arith.constant 0 : index
    %c0_2 = arith.constant 0 : index
    %1 = vector.load %arg3[%c0_1, %c0_2] : memref<32x32xf32, #tpu.memory_space<vmem>>, vector<32x32xf32>
    %cst = arith.constant dense<0.000000e+00> : vector<2x32xf32>
    %2 = tpu.matmul %0, %1, %cst {dimension_numbers = #tpu.dot_dimension_numbers<[1], [0], [0], [1], [0, 0, 1, 1], [], []>} : vector<2x32xf32>, vector<32x32xf32>, vector<2x32xf32> -> vector<2x32xf32>
    %c0_3 = arith.constant 0 : index
    %c0_4 = arith.constant 0 : index
    %3 = vector.load %arg5[%c0_3, %c0_4] : memref<1x32xf32, #tpu.memory_space<vmem>>, vector<1x32xf32>
    %4 = vector.broadcast %3 : vector<1x32xf32> to vector<2x32xf32>
    %5 = arith.addf %2, %4 : vector<2x32xf32>
    %c0_5 = arith.constant 0 : index
    %c0_6 = arith.constant 0 : index
    %c0_7 = arith.constant 0 : index
    %6 = vector.load %arg2[%c0_5, %c0_6, %c0_7] : memref<2x8x64xf32, #tpu.memory_space<vmem>>, vector<2x8x64xf32>
    %7 = vector.shape_cast %6 : vector<2x8x64xf32> to vector<16x64xf32>
    %c0_8 = arith.constant 0 : index
    %c0_9 = arith.constant 0 : index
    %8 = vector.load %arg4[%c0_8, %c0_9] : memref<64x32xf32, #tpu.memory_space<vmem>>, vector<64x32xf32>
    %cst_10 = arith.constant dense<0.000000e+00> : vector<16x32xf32>
    %9 = tpu.matmul %7, %8, %cst_10 {dimension_numbers = #tpu.dot_dimension_numbers<[1], [0], [0], [1], [0, 0, 1, 1], [], []>} : vector<16x64xf32>, vector<64x32xf32>, vector<16x32xf32> -> vector<16x32xf32>
    %10 = vector.shape_cast %9 : vector<16x32xf32> to vector<2x8x32xf32>
    %11 = vector.shape_cast %5 : vector<2x32xf32> to vector<2x1x32xf32>
    %12 = vector.broadcast %11 : vector<2x1x32xf32> to vector<2x8x32xf32>
    %13 = arith.addf %10, %12 : vector<2x8x32xf32>
    %14 = math.tanh %13 : vector<2x8x32xf32>
    %c0_11 = arith.constant 0 : index
    %c0_12 = arith.constant 0 : index
    %15 = vector.load %arg6[%c0_11, %c0_12] : memref<1x32xf32, #tpu.memory_space<vmem>>, vector<1x32xf32>
    %16 = vector.shape_cast %15 : vector<1x32xf32> to vector<1x1x32xf32>
    %17 = vector.broadcast %16 : vector<1x1x32xf32> to vector<2x8x32xf32>
    %18 = arith.mulf %14, %17 : vector<2x8x32xf32>
    %cst_13 = arith.constant dense<0.000000e+00> : vector<2x8xf32>
    %19 = vector.multi_reduction <add>, %18, %cst_13 [2] : vector<2x8x32xf32> to vector<2x8xf32>
    %cst_14 = arith.constant dense<0xFF800000> : vector<2xf32>
    %20 = vector.multi_reduction <maximumf>, %19, %cst_14 [1] : vector<2x8xf32> to vector<2xf32>
    %21 = vector.shape_cast %20 : vector<2xf32> to vector<2x1xf32>
    %22 = vector.broadcast %21 : vector<2x1xf32> to vector<2x8xf32>
    %23 = arith.subf %19, %22 : vector<2x8xf32>
    %24 = math.exp %23 : vector<2x8xf32>
    %cst_15 = arith.constant dense<0.000000e+00> : vector<2xf32>
    %25 = vector.multi_reduction <add>, %24, %cst_15 [1] : vector<2x8xf32> to vector<2xf32>
    %26 = vector.shape_cast %25 : vector<2xf32> to vector<2x1xf32>
    %27 = vector.broadcast %26 : vector<2x1xf32> to vector<2x8xf32>
    %28 = arith.divf %24, %27 : vector<2x8xf32>
    %c0_16 = arith.constant 0 : index
    %c0_17 = arith.constant 0 : index
    %29 = vector.load %arg7[%c0_16, %c0_17] : memref<2x8xf32, #tpu.memory_space<vmem>>, vector<2x8xf32>
    tpu.vector_store %arg7[%c0_16, %c0_17], %28 {strides = array<i32>} : memref<2x8xf32, #tpu.memory_space<vmem>>, vector<2x8xf32>,
    return
  }
  func.func @transform_0(%arg0: i32) -> (i32, i32) {
    %c0_i32 = arith.constant 0 : i32
    %c0_i32_0 = arith.constant 0 : i32
    return %arg0, %c0_i32 : i32, i32
  }
  func.func @transform_1(%arg0: i32) -> (i32, i32, i32) {
    %c0_i32 = arith.constant 0 : i32
    %c0_i32_0 = arith.constant 0 : i32
    %c0_i32_1 = arith.constant 0 : i32
    return %arg0, %c0_i32, %c0_i32_0 : i32, i32, i32
  }
  func.func @transform_2(%arg0: i32) -> (i32, i32) {
    %c0_i32 = arith.constant 0 : i32
    %c0_i32_0 = arith.constant 0 : i32
    %c0_i32_1 = arith.constant 0 : i32
    return %c0_i32, %c0_i32_0 : i32, i32
  }
  func.func @transform_3(%arg0: i32) -> (i32, i32) {
    %c0_i32 = arith.constant 0 : i32
    %c0_i32_0 = arith.constant 0 : i32
    %c0_i32_1 = arith.constant 0 : i32
    return %c0_i32, %c0_i32_0 : i32, i32
  }
  func.func @transform_4(%arg0: i32) -> (i32, i32) {
    %c0_i32 = arith.constant 0 : i32
    %c0_i32_0 = arith.constant 0 : i32
    %c0_i32_1 = arith.constant 0 : i32
    return %c0_i32, %c0_i32_0 : i32, i32
  }
  func.func @transform_5(%arg0: i32) -> (i32, i32) {
    %c0_i32 = arith.constant 0 : i32
    %c0_i32_0 = arith.constant 0 : i32
    %c0_i32_1 = arith.constant 0 : i32
    return %c0_i32, %c0_i32_0 : i32, i32
  }
  func.func @transform_6(%arg0: i32) -> (i32, i32) {
    %c0_i32 = arith.constant 0 : i32
    %c0_i32_0 = arith.constant 0 : i32
    return %arg0, %c0_i32 : i32, i32
  }
}

</mosaic_0001>

<llo_original>
// kernel: attention_forward.1
$region0: #{attention_forward.1}
  #allocation0 [shape = 'u32[]', space=smem, size = 0x4, offset = 0x4, fixed_abs, tag = 'smem constant byte address 0x4 - core index']
  #allocation1 [shape = 'u32[144,128]{1,0:T(1,128)}', space=vmem, size = 0x12000, scoped, tag = 'internal scratch']
  %s0 = inlined_call_operand.vmem [shape: f32[2,32], index: 0, kind: input, shape index: {}]
  %s1 = inlined_call_operand.vmem [shape: f32[2,8,64], index: 1, kind: input, shape index: {}]
  %s2 = inlined_call_operand.vmem [shape: f32[32,32], index: 2, kind: input, shape index: {}]
  %s3 = inlined_call_operand.vmem [shape: f32[64,32], index: 3, kind: input, shape index: {}]
  %s4 = inlined_call_operand.vmem [shape: f32[1,32], index: 4, kind: input, shape index: {}]
  %s5 = inlined_call_operand.vmem [shape: f32[1,32], index: 5, kind: input, shape index: {}]
  %s6 = inlined_call_operand.hbm [shape: f32[2,8], index: 6, kind: output, shape index: {}]
  %s7 = sld [smem:[#allocation0]]
  $region34: #{attention_forward.1} parent=0
    _
  %s9 = ssub.s32 1, %s7
  %s10 = scalar_select 0, %s9, %s7
  $region1: #{attention_forward.1} parent=0
    #allocation2 [shape = 'u8[1024]{0}', space=vmem, size = 0x400, scoped, tag = 'output window, operand 0, single buffered']
    #allocation3 [shape = 's32[1]{0}', space=sflag, size = 0x4, scoped, tag = 'scoped memory for attention_forward.1']
    %11 = vsyncpa [#allocation3], 0
    // Predicated region
    $region2: #{attention_forward.1} parent=1 // pred_check
      _
    $region3: #{attention_forward.1} parent=1 // pred_check_branch
      %13 = sbr.rel (0) target = $region5
    $region4: #{attention_forward.1} parent=1 // pred_region
      _
    $region5: #{attention_forward.1} parent=1 // pred_fallthru
      _
    // Predicated region
    $region6: #{attention_forward.1} parent=1 // pred_check
      _
    $region7: #{attention_forward.1} parent=1 // pred_check_branch
      %15 = sbr.rel (0) target = $region9
    $region8: #{attention_forward.1} parent=1 // pred_region
      _
    $region9: #{attention_forward.1} parent=1 // pred_fallthru
      _
    // Predicated region
    $region10: #{attention_forward.1} parent=1 // pred_check
      _
    $region11: #{attention_forward.1} parent=1 // pred_check_branch
      %17 = sbr.rel (0) target = $region13
    $region12: #{attention_forward.1} parent=1 // pred_region
      _
    $region13: #{attention_forward.1} parent=1 // pred_fallthru
      _
    // Predicated region
    $region14: #{attention_forward.1} parent=1 // pred_check
      _
    $region15: #{attention_forward.1} parent=1 // pred_check_branch
      %19 = sbr.rel (0) target = $region17
    $region16: #{attention_forward.1} parent=1 // pred_region
      _
    $region17: #{attention_forward.1} parent=1 // pred_fallthru
      _
    // Predicated region
    $region18: #{attention_forward.1} parent=1 // pred_check
      _
    $region19: #{attention_forward.1} parent=1 // pred_check_branch
      %21 = sbr.rel (0) target = $region21
    $region20: #{attention_forward.1} parent=1 // pred_region
      _
    $region21: #{attention_forward.1} parent=1 // pred_fallthru
      _
    // Predicated region
    $region22: #{attention_forward.1} parent=1 // pred_check
      _
    $region23: #{attention_forward.1} parent=1 // pred_check_branch
      %23 = sbr.rel (0) target = $region25
    $region24: #{attention_forward.1} parent=1 // pred_region
      _
    $region25: #{attention_forward.1} parent=1 // pred_fallthru
      _
    %v24 = vld [vmem:[%s0] sm:$0x3]
    %v25 = vld [vmem:[%s2] sm:$0xff]
    %v26 = vld [vmem:[%s2 + $0x8] sm:$0xff]
    %v27 = vld [vmem:[%s2 + $0x10] sm:$0xff]
    %v28 = vld [vmem:[%s2 + $0x18] sm:$0xff]
    %v29 = vld [vmem:[%s4] sm:$0x1]
    %v31 = vlaneseq
    %v32 = vshrl.u32 %v31, 7
    %v33 = vsub.s32 0, %v32
    %v34 = vrot.slane %v29, %v33
    %vm36 = vcmask 261120
    %v38 = vsel %vm36, %v24, 0
    %40 = vmatprep.subr.mxu0 0.0
    %41 = vmatpush1.msra.mxu0 %v25
    %42 = vmatprep.subr.mxu0 0.0
    %43 = vmatpush1.msra.mxu0 %v26
    %44 = vmatprep.subr.mxu0 0.0
    %45 = vmatpush1.msra.mxu0 %v27
    %46 = vmatprep.subr.mxu0 0.0
    %47 = vmatpush1.msra.mxu0 %v28
    %48 = vmatprep.subr.mxu0 0.0
    %49 = vmatpush1.msra.mxu0 0.0
    %50 = vmatprep.subr.mxu0 0.0
    %51 = vmatpush1.msra.mxu0 0.0
    %52 = vmatprep.subr.mxu0 0.0
    %53 = vmatpush1.msra.mxu0 0.0
    %54 = vmatprep.subr.mxu0 0.0
    %55 = vmatpush1.msra.mxu0 0.0
    %56 = vmatprep.subr.mxu0 0.0
    %57 = vmatpush1.msra.mxu0 0.0
    %58 = vmatprep.subr.mxu0 0.0
    %59 = vmatpush1.msra.mxu0 0.0
    %60 = vmatprep.subr.mxu0 0.0
    %61 = vmatpush1.msra.mxu0 0.0
    %62 = vmatprep.subr.mxu0 0.0
    %63 = vmatpush1.msra.mxu0 0.0
    %64 = vmatprep.subr.mxu0 0.0
    %65 = vmatpush1.msra.mxu0 0.0
    %66 = vmatprep.subr.mxu0 0.0
    %67 = vmatpush1.msra.mxu0 0.0
    %68 = vmatprep.subr.mxu0 0.0
    %69 = vmatpush1.msra.mxu0 0.0
    %70 = vmatprep.subr.mxu0 0.0
    %71 = vmatpush1.msra.mxu0 0.0
    %72 = vmatprep.subr.mxu0 0.0
    %73 = vmatpush1.msra.mxu0 0.0
    %74 = vmatprep.subr.mxu0 0.0
    %75 = vmatpush1.msra.mxu0 0.0
    %76 = vmatprep.subr.mxu0 0.0
    %77 = vmatpush1.msra.mxu0 0.0
    %78 = vmatprep.subr.mxu0 0.0
    %79 = vmatpush1.msra.mxu0 0.0
    %80 = vmatprep.subr.mxu0 0.0
    %81 = vmatpush1.msra.mxu0 0.0
    %82 = vmatprep.subr.mxu0 0.0
    %83 = vmatpush1.msra.mxu0 0.0
    %84 = vmatprep.subr.mxu0 0.0
    %85 = vmatpush1.msra.mxu0 0.0
    %86 = vmatprep.subr.mxu0 0.0
    %87 = vmatpush1.msra.mxu0 0.0
    %88 = vmatprep.subr.mxu0 0.0
    %89 = vmatpush1.msra.mxu0 0.0
    %90 = vmatprep.subr.mxu0 0.0
    %91 = vmatpush1.msra.mxu0 0.0
    %92 = vmatprep.subr.mxu0 0.0
    %93 = vmatpush1.msra.mxu0 0.0
    %94 = vmatprep.subr.mxu0 0.0
    %95 = vmatpush1.msra.mxu0 0.0
    %96 = vmatprep.subr.mxu0 0.0
    %97 = vmatpush1.msra.mxu0 0.0
    %98 = vmatprep.subr.mxu0 0.0
    %99 = vmatpush1.msra.mxu0 0.0
    %100 = vmatprep.subr.mxu0 0.0
    %101 = vmatpush1.msra.mxu0 0.0
    %102 = vmatprep.subr.mxu0 0.0
    %103 = vmatpush1.msra.mxu0 0.0
    %104 = vmatprep.mubr.f32.mxu0 0.0
    %105 = vmatmul.mubr.f32.gmra.mrb[0].mxu0 %v38
    %v106 = vpop.f32.mrb[0].mxu0
    %v107 = vadd.f32 %v34, %v106
    %v108 = vpop.f32.mrb[0].mxu0
    %109 = vdwg.mxu0
    %v110 = vld [vmem:[%s1] sm:$0xff]
    %v111 = vld [vmem:[%s1 + $0x8] sm:$0xff]
    %v112 = vld [vmem:[%s3] sm:$0xff]
    %v113 = vld [vmem:[%s3 + $0x8] sm:$0xff]
    %v114 = vld [vmem:[%s3 + $0x10] sm:$0xff]
    %v115 = vld [vmem:[%s3 + $0x18] sm:$0xff]
    %v116 = vld [vmem:[%s3 + $0x20] sm:$0xff]
    %v117 = vld [vmem:[%s3 + $0x28] sm:$0xff]
    %v118 = vld [vmem:[%s3 + $0x30] sm:$0xff]
    %v119 = vld [vmem:[%s3 + $0x38] sm:$0xff]
    %vm120 = vcmask 523264
    %v122 = vsel %vm120, %v110, 0
    %v125 = vsel %vm120, %v111, 0
    %127 = vmatprep.subr.mxu0 0.0
    %128 = vmatpush1.msra.mxu0 %v112
    %129 = vmatprep.subr.mxu0 0.0
    %130 = vmatpush1.msra.mxu0 %v113
    %131 = vmatprep.subr.mxu0 0.0
    %132 = vmatpush1.msra.mxu0 %v114
    %133 = vmatprep.subr.mxu0 0.0
    %134 = vmatpush1.msra.mxu0 %v115
    %135 = vmatprep.subr.mxu0 0.0
    %136 = vmatpush1.msra.mxu0 %v116
    %137 = vmatprep.subr.mxu0 0.0
    %138 = vmatpush1.msra.mxu0 %v117
    %139 = vmatprep.subr.mxu0 0.0
    %140 = vmatpush1.msra.mxu0 %v118
    %141 = vmatprep.subr.mxu0 0.0
    %142 = vmatpush1.msra.mxu0 %v119
    %143 = vmatprep.subr.mxu0 0.0
    %144 = vmatpush1.msra.mxu0 0.0
    %145 = vmatprep.subr.mxu0 0.0
    %146 = vmatpush1.msra.mxu0 0.0
    %147 = vmatprep.subr.mxu0 0.0
    %148 = vmatpush1.msra.mxu0 0.0
    %149 = vmatprep.subr.mxu0 0.0
    %150 = vmatpush1.msra.mxu0 0.0
    %151 = vmatprep.subr.mxu0 0.0
    %152 = vmatpush1.msra.mxu0 0.0
    %153 = vmatprep.subr.mxu0 0.0
    %154 = vmatpush1.msra.mxu0 0.0
    %155 = vmatprep.subr.mxu0 0.0
    %156 = vmatpush1.msra.mxu0 0.0
    %157 = vmatprep.subr.mxu0 0.0
    %158 = vmatpush1.msra.mxu0 0.0
    %159 = vmatprep.subr.mxu0 0.0
    %160 = vmatpush1.msra.mxu0 0.0
    %161 = vmatprep.subr.mxu0 0.0
    %162 = vmatpush1.msra.mxu0 0.0
    %163 = vmatprep.subr.mxu0 0.0
    %164 = vmatpush1.msra.mxu0 0.0
    %165 = vmatprep.subr.mxu0 0.0
    %166 = vmatpush1.msra.mxu0 0.0
    %167 = vmatprep.subr.mxu0 0.0
    %168 = vmatpush1.msra.mxu0 0.0
    %169 = vmatprep.subr.mxu0 0.0
    %170 = vmatpush1.msra.mxu0 0.0
    %171 = vmatprep.subr.mxu0 0.0
    %172 = vmatpush1.msra.mxu0 0.0
    %173 = vmatprep.subr.mxu0 0.0
    %174 = vmatpush1.msra.mxu0 0.0
    %175 = vmatprep.subr.mxu0 0.0
    %176 = vmatpush1.msra.mxu0 0.0
    %177 = vmatprep.subr.mxu0 0.0
    %178 = vmatpush1.msra.mxu0 0.0
    %179 = vmatprep.subr.mxu0 0.0
    %180 = vmatpush1.msra.mxu0 0.0
    %181 = vmatprep.subr.mxu0 0.0
    %182 = vmatpush1.msra.mxu0 0.0
    %183 = vmatprep.subr.mxu0 0.0
    %184 = vmatpush1.msra.mxu0 0.0
    %185 = vmatprep.subr.mxu0 0.0
    %186 = vmatpush1.msra.mxu0 0.0
    %187 = vmatprep.subr.mxu0 0.0
    %188 = vmatpush1.msra.mxu0 0.0
    %189 = vmatprep.subr.mxu0 0.0
    %190 = vmatpush1.msra.mxu0 0.0
    %191 = vmatprep.mubr.f32.mxu0 0.0
    %192 = vmatmul.mubr.f32.gmra.mrb[0].mxu0 %v122
    %v193 = vpop.f32.mrb[0].mxu0
    %v194 = vadd.f32 0.0, %v193
    %v195 = vpop.f32.mrb[0].mxu0
    %196 = vmatprep.mubr.f32.mxu0 0.0
    %197 = vmatmul.mubr.f32.gmra.mrb[0].mxu0 %v125
    %v198 = vpop.f32.mrb[0].mxu0
    %v199 = vadd.f32 0.0, %v198
    %v200 = vpop.f32.mrb[0].mxu0
    %201 = vdwg.mxu0
    %v204 = vunpack.c.l.s4 1966171168
    %v205 = vunpack.c.0.s8 %v204
    %v206 = vlaneseq
    %v207 = vshrl.u32 %v206, 7
    %v208 = vsub.s32 %v205, %v207
    %v209 = vrot.slane %v107, %v208
    %v210 = vcombine.high %v209, %v209
    %v212 = vunpack.c.l.s4 1966171168
    %v213 = vunpack.c.0.s8 %v212
    %v214 = vlaneseq
    %v215 = vshrl.u32 %v214, 7
    %v216 = vsub.s32 %v213, %v215
    %v217 = vrot.slane %v209, %v216
    %v219 = vunpack.c.l.s4 1966171168
    %v220 = vunpack.c.0.s8 %v219
    %v221 = vlaneseq
    %v222 = vshrl.u32 %v221, 7
    %v223 = vsub.s32 %v220, %v222
    %v224 = vrot.slane %v210, %v223
    %v225 = vlaneseq
    %v226 = vshrl.u32 %v225, 7
    %v227 = vsub.s32 0, %v226
    %v228 = vrot.slane %v217, %v227
    %v229 = vlaneseq
    %v230 = vshrl.u32 %v229, 7
    %v231 = vsub.s32 0, %v230
    %v232 = vrot.slane %v224, %v231
    %v235 = vadd.f32 %v194, %v228
    %v236 = vadd.f32 %v199, %v232
    %v237 = vtanh.pop %v235
    %v238 = vtanh.pop %v236
    %v239 = vld [vmem:[%s5] sm:$0x1]
    %v241 = vlaneseq
    %v242 = vshrl.u32 %v241, 7
    %v243 = vsub.s32 0, %v242
    %v244 = vrot.slane %v239, %v243
    %v246 = vmul.f32 %v237, %v244
    %v247 = vmul.f32 %v238, %v244
    %v248 = vsel %vm36, %v246, 0.0
    %249 = vadd.xlane.f32.xlu0 %v248
    %v250 = vpop.xlane.xlu0 %249
    %v251 = vsel %vm36, %v247, 0.0
    %252 = vadd.xlane.f32.xlu0 %v251
    %v253 = vpop.xlane.xlu0 %252
    %v256 = vlaneseq
    %v257 = vand.u32 %v256, 127
    %v258 = vlaneseq
    %v259 = vshrl.u32 %v258, 7
    %v260 = vsub.s32 %v257, %v259
    %v261 = vrot.slane %v250, %v260
    %v262 = vlaneseq
    %v263 = vshrl.u32 %v262, 7
    %v264 = vsub.s32 %v257, %v263
    %v265 = vrot.slane %v253, %v264
    %vm266 = vcmask 1041409
    %v267 = vsel %vm266, %v265, %v261
    %vm269 = vcmask 58368
    %v270 = vsel %vm269, %v267, -inf
    %271 = vmax.xlane.f32.xlu0 %v270
    %v272 = vpop.xlane.xlu0 %271
    %v274 = vlaneseq
    %v275 = vshrl.u32 %v274, 7
    %v276 = vsub.s32 0, %v275
    %v277 = vrot.slane %v272, %v276
    %v278 = vlaneseq
    %v279 = vshrl.u32 %v278, 7
    %v280 = vsub.s32 1, %v279
    %v281 = vrot.slane %v272, %v280
    %v284 = vsub.f32 %v250, %v277
    %v285 = vsub.f32 %v253, %v281
    %v286 = vmul.f32 %v284, 1.442695
    %v287 = vpow.pop %v286
    %v288 = vmul.f32 %v285, 1.442695
    %v289 = vpow.pop %v288
    %292 = vset.pattern.permute.xlu0 0
    %293 = vperm.xlu0 %292, %v287
    %v294 = vpop.permute.xlu0 %293
    %295 = vset.pattern.permute.xlu0 0
    %296 = vperm.xlu0 %295, %v289
    %v297 = vpop.permute.xlu0 %296
    %v298 = vlaneseq
    %v299 = vshrl.u32 %v298, 7
    %v300 = vsub.s32 %v257, %v299
    %v301 = vrot.slane %v294, %v300
    %v302 = vlaneseq
    %v303 = vshrl.u32 %v302, 7
    %v304 = vsub.s32 %v257, %v303
    %v305 = vrot.slane %v297, %v304
    %v306 = vsel %vm266, %v305, %v301
    %v308 = vsel %vm269, %v306, 0.0
    %309 = vadd.xlane.f32.xlu0 %v308
    %v310 = vpop.xlane.xlu0 %309
    %v312 = vlaneseq
    %v313 = vshrl.u32 %v312, 7
    %v314 = vsub.s32 0, %v313
    %v315 = vrot.slane %v310, %v314
    %v316 = vlaneseq
    %v317 = vshrl.u32 %v316, 7
    %v318 = vsub.s32 1, %v317
    %v319 = vrot.slane %v310, %v318
    %v322 = vrcp.pop %v315
    %v323 = vmul.f32 %v287, %v322
    %v324 = vrcp.pop %v319
    %v325 = vmul.f32 %v289, %v324
    %328 = vset.pattern.permute.xlu0 0
    %329 = vperm.xlu0 %328, %v323
    %v330 = vpop.permute.xlu0 %329
    %331 = vset.pattern.permute.xlu0 0
    %332 = vperm.xlu0 %331, %v325
    %v333 = vpop.permute.xlu0 %332
    %v334 = vlaneseq
    %v335 = vshrl.u32 %v334, 7
    %v336 = vsub.s32 %v257, %v335
    %v337 = vrot.slane %v330, %v336
    %v338 = vlaneseq
    %v339 = vshrl.u32 %v338, 7
    %v340 = vsub.s32 %v257, %v339
    %v341 = vrot.slane %v333, %v340
    %v342 = vsel %vm266, %v341, %v337
    %344 = vst.msk [vmem:[#allocation2] sm:$0x3] %vm269, %v342
    // Predicated region
    $region26: #{attention_forward.1} parent=1 // pred_check
      _
    $region27: #{attention_forward.1} parent=1 // pred_check_branch
      %346 = sbr.rel (0) target = $region29
    $region28: #{attention_forward.1} parent=1 // pred_region
      %s348 = ssub.s32 32, 32
      %349 = vsyncadd [#allocation3], %s348
      %s351 = sshll.u32 [#allocation2], 4
      %s352 = int_to_ptr.vmem [resolvable:$true] %s351
      %354 = dma.vmem_to_hbm [thread:$0]  %s352, 32, %s6, [#allocation3]
    $region29: #{attention_forward.1} parent=1 // pred_fallthru
      _
    // Predicated region
    $region30: #{attention_forward.1} parent=1 // pred_check
      _
    $region31: #{attention_forward.1} parent=1 // pred_check_branch
      %356 = sbr.rel (0) target = $region33
    $region32: #{attention_forward.1} parent=1 // pred_region
      %357 = dma.done [#allocation3], 32
    $region33: #{attention_forward.1} parent=1 // pred_fallthru
      _
    %358 = vsyncpa [#allocation3], 1

</llo_original>
